<compile_context>
chip_gen: v5e
topology: v5e:2x2
jax: 0.10.0
libtpu: 0.0.40
codegen_flags: <defaults>
</compile_context>

<pallas_src>
import jax
import jax.numpy as jnp
from jax.experimental import pallas as pl
from jax.experimental.pallas import tpu as pltpu


# ---------------------------------------------------------------------------
# Packed parameter slab layout: (400, 64).
# Each weight starts at an 8-aligned row so static ref slices never force a
# sublane relayout.  Regions padded with zeros (zero weight cols + zero bias
# cols -> relu(0)=0 -> exact math downstream).
#   rows [  0, 40)  w0   (40, 64)
#   rows [ 40,104)  w1   (64, 64)
#   rows [104,168)  w2   (64, 64)  real cols 0-31, cols 32-63 zero
#   rows [168,232)  w3a  (64, 64)  real rows 0-31, rows 32-63 zero
#   rows [232,264)  w3b  (30, 64)  rows 262-263 zero padding
#   rows [264,328)  w4   (64, 64)  real cols 0-31, cols 32-63 zero
#   rows [328,392)  w5   (64, 64)  real rows 0-31 / cols 0-2, rest zero
#   rows [392,398)  b0..b5 (one bias per row, zero-padded to 64 lanes)
# ---------------------------------------------------------------------------
_OFF_W0, _OFF_W1, _OFF_W2, _OFF_W3A, _OFF_W3B, _OFF_W4, _OFF_W5, _OFF_B = (
    0, 40, 104, 168, 232, 264, 328, 392)
_PACK_ROWS, _PACK_COLS = 400, 64


def _blend_mlp_kernel(x_ref, r_ref, p_ref, o_ref):
    wdt = p_ref.dtype             # matmul operand dtype (f32 or bf16)
    f32 = jnp.float32

    def W(off, rows):             # static slice of the packed weight slab
        return p_ref[off:off + rows, :]

    def B(i):                     # bias row i, broadcast over the row tile
        return p_ref[_OFF_B + i:_OFF_B + i + 1, :].astype(f32)   # (1, 64)

    x = x_ref[...].astype(wdt)    # (T, 40) neighbor feats

    # l0: Linear(40 -> 64) + ReLU
    h = jnp.dot(x, W(_OFF_W0, 40), preferred_element_type=f32) + B(0)
    h = jnp.maximum(h, 0.0).astype(wdt)
    # l1: Linear(64 -> 64) + ReLU
    h = jnp.dot(h, W(_OFF_W1, 64), preferred_element_type=f32) + B(1)
    h = jnp.maximum(h, 0.0).astype(wdt)
    # l2: Linear(64 -> 32) + ReLU  (cols 32-63 of h are exactly 0 by padding)
    h = jnp.dot(h, W(_OFF_W2, 64), preferred_element_type=f32) + B(2)
    h = jnp.maximum(h, 0.0).astype(wdt)
    # l3: Linear(concat([h, r], -1): 62 -> 64) + ReLU
    # concat + one matmul == split-weight sum of two matmuls (exact).
    # r is loaded HERE so its live range does not span l0-l2.
    r = r_ref[...].astype(wdt)    # (T, 30) ray rgb feats
    h = (jnp.dot(h, W(_OFF_W3A, 64), preferred_element_type=f32)
         + jnp.dot(r, W(_OFF_W3B, 30), preferred_element_type=f32)
         + B(3))
    h = jnp.maximum(h, 0.0).astype(wdt)
    # l4: Linear(64 -> 32) + ReLU  (cols 32-63 of h are exactly 0 by padding)
    h = jnp.dot(h, W(_OFF_W4, 64), preferred_element_type=f32) + B(4)
    h = jnp.maximum(h, 0.0).astype(wdt)
    # l5: Linear(32 -> 3) + Sigmoid.  Only lanes 0-2 of the padded result are
    # real; slice them before the sigmoid and the (T, 3) store.
    logits = jnp.dot(h, W(_OFF_W5, 64), preferred_element_type=f32) + B(5)   # (T, 64)
    o_ref[...] = jax.nn.sigmoid(logits[:, :3]).astype(o_ref.dtype)


def blend_mlp_forward(neighbor_feats, ray_rgb_feats, packed_params, *,
                      tile_rows=2048, dimension_semantics=None):
    """neighbor_feats: (..., 40), ray_rgb_feats: (..., 30) -> (..., 3).

    packed_params: (400, 64) slab from pack_params().
    tile_rows: rows per grid step (multiple of 8).  2048 is a good default on
      all generations; sweep 2048-4096 (v5e/v7x) and up to 8192 on v6e.
    dimension_semantics: default (pltpu.PARALLEL,).  On v7x pass
      (pltpu.CORE_PARALLEL,) to split the row grid across both TensorCores.
    """
    lead_shape = neighbor_feats.shape[:-1]
    assert neighbor_feats.shape[-1] == 40 and ray_rgb_feats.shape[-1] == 30
    assert ray_rgb_feats.shape[:-1] == lead_shape
    assert packed_params.shape == (_PACK_ROWS, _PACK_COLS), packed_params.shape
    assert tile_rows % 8 == 0, "tile_rows must be a multiple of 8"

    x = neighbor_feats.reshape(-1, 40)
    r = ray_rgb_feats.reshape(-1, 30)
    n_rows = x.shape[0]
    out_dtype = neighbor_feats.dtype

    # Small inputs: one block covering the whole array (always legal).
    # Large inputs: tile_rows tiles; ragged tail handled by Pallas block
    # clamping (no wrapper-side pad copy).
    tile = n_rows if n_rows <= tile_rows else tile_rows
    grid = (pl.cdiv(n_rows, tile),)

    # --- VMEM budget: double-buffered padded-lane inputs/output + live f32
    # intermediates + (double-buffered) param slab, with 1.5x headroom, clamped
    # to [32 MiB, 48 MiB] so it is safe on v5e/v6e/v7x alike.
    lane = 128
    param_bytes = int(packed_params.size) * packed_params.dtype.itemsize
    io_bytes = tile * lane * (x.dtype.itemsize + r.dtype.itemsize
                              + jnp.dtype(out_dtype).itemsize)
    vmem_est = 2 * io_bytes + 2 * param_bytes + tile * lane * 4 * 6
    vmem_limit = int(min(48 << 20, max(32 << 20, (vmem_est * 3) // 2)))

    sem = dimension_semantics if dimension_semantics is not None else (pltpu.PARALLEL,)

    # Advisory cost estimate (sigmoid ~ exp + reciprocal per element; bytes use
    # the padded 128-lane layouts the DMA/VMEM actually see).
    flops = 2 * n_rows * (40 * 64 + 64 * 64 + 64 * 32 + 32 * 64 + 30 * 64
                          + 64 * 32 + 32 * 3)
    transcendentals = 2 * 3 * n_rows
    bytes_accessed = (n_rows * lane * (x.dtype.itemsize + r.dtype.itemsize
                                       + jnp.dtype(out_dtype).itemsize)
                      + param_bytes)

    out = pl.pallas_call(
        _blend_mlp_kernel,
        out_shape=jax.ShapeDtypeStruct((n_rows, 3), out_dtype),
        grid_spec=pltpu.PrefetchScalarGridSpec(
            num_scalar_prefetch=0,
            grid=grid,
            in_specs=[
                pl.BlockSpec((tile, 40), lambda i: (i, 0)),
                pl.BlockSpec((tile, 30), lambda i: (i, 0)),
                # whole packed param slab, constant block index -> stays
                # resident in VMEM across grid steps
                pl.BlockSpec((_PACK_ROWS, _PACK_COLS), lambda i: (0, 0)),
            ],
            out_specs=pl.BlockSpec((tile, 3), lambda i: (i, 0)),
        ),
        compiler_params=pltpu.CompilerParams(
            dimension_semantics=sem,
            vmem_limit_bytes=vmem_limit),
        cost_estimate=pl.CostEstimate(
            flops=flops, transcendentals=transcendentals,
            bytes_accessed=bytes_accessed),
    )(x, r, packed_params)

    return out.reshape(*lead_shape, 3)   # metadata-only reshape (contiguous)


# ---------------------------------------------------------------------------
# Parameter helpers
# ---------------------------------------------------------------------------
def pack_params(w0, b0, w1, b1, w2, b2, w3, b3, w4, b4, w5, b5):
    """Pack per-layer params into the (400, 64) kernel slab.

    Weights are [in, out] (transpose of torch nn.Linear.weight); biases 1-D.
    """
    assert w0.shape == (40, 64) and w1.shape == (64, 64) and w2.shape == (64, 32)
    assert w3.shape == (62, 64) and w4.shape == (64, 32) and w5.shape == (32, 3)
    dtype = w0.dtype
    P = jnp.zeros((_PACK_ROWS, _PACK_COLS), dtype)

    def put_w(P, off, w):
        fi, fo = w.shape
        return P.at[off:off + fi, :fo].set(w.astype(dtype))

    w3a, w3b = w3[:32, :], w3[32:, :]
    P = put_w(P, _OFF_W0, w0)
    P = put_w(P, _OFF_W1, w1)
    P = put_w(P, _OFF_W2, w2)
    P = put_w(P, _OFF_W3A, w3a)
    P = put_w(P, _OFF_W3B, w3b)
    P = put_w(P, _OFF_W4, w4)
    P = put_w(P, _OFF_W5, w5)
    for i, b in enumerate((b0, b1, b2, b3, b4, b5)):
        b = b.reshape(-1)
        P = P.at[_OFF_B + i, :b.shape[0]].set(b.astype(dtype))
    return P


def init_params(key, dtype=jnp.float32):
    """Kaiming-normal (fan_in, gain=sqrt(2)) weights, zero biases (weights_init).

    Returns the raw per-layer tuple (same math as the torch module); pack with
    pack_params() before calling blend_mlp_forward().
    """
    def kaiming(k, fan_in, fan_out):
        std = (2.0 / fan_in) ** 0.5
        return (jax.random.normal(k, (fan_in, fan_out)) * std).astype(dtype)

    ks = jax.random.split(key, 6)
    w0 = kaiming(ks[0], 40, 64)
    w1 = kaiming(ks[1], 64, 64)
    w2 = kaiming(ks[2], 64, 32)
    w3 = kaiming(ks[3], 62, 64)     # Linear(32 + 30, 64)
    w4 = kaiming(ks[4], 64, 32)
    w5 = kaiming(ks[5], 32, 3)

    def zb(n):
        return jnp.zeros((n,), dtype)

    return (w0, zb(64), w1, zb(64), w2, zb(32), w3, zb(64), w4, zb(32), w5, zb(3))


def blend_mlp_reference(neighbor_feats, ray_rgb_feats, raw_params):
    """Pure-JAX f32 reference matching the PyTorch forward semantics."""
    w0, b0, w1, b1, w2, b2, w3, b3, w4, b4, w5, b5 = [
        p.astype(jnp.float32) for p in raw_params]
    x = neighbor_feats.astype(jnp.float32)
    r = ray_rgb_feats.astype(jnp.float32)
    h = jax.nn.relu(x @ w0 + b0)
    h = jax.nn.relu(h @ w1 + b1)
    h = jax.nn.relu(h @ w2 + b2)
    h = jax.nn.relu(jnp.concatenate([h, r], axis=-1) @ w3 + b3)
    h = jax.nn.relu(h @ w4 + b4)
    return jax.nn.sigmoid(h @ w5 + b5)


if __name__ == "__main__":
    key = jax.random.PRNGKey(0)
    k_p, k_x, k_r = jax.random.split(key, 3)

    raw = init_params(k_p)           # f32 master params (torch-equivalent init)
    packed = pack_params(*raw)       # (400, 64) kernel slab

    # small shapes consistent with the forward: (..., 40) and (..., 30)
    batch, rays = 2, 8
    neighbor_feats = jax.random.normal(k_x, (batch, rays, 40), jnp.float32)
    ray_rgb_feats = jax.random.normal(k_r, (batch, rays, 30), jnp.float32)

    ref = blend_mlp_reference(neighbor_feats, ray_rgb_feats, raw)

    # f32 data path, single-block grid
    out = blend_mlp_forward(neighbor_feats, ray_rgb_feats, packed)
    out = jax.block_until_ready(out)
    assert out.shape == (batch, rays, 3), out.shape
    assert jnp.allclose(out, ref, atol=1e-4, rtol=1e-4), "f32 kernel mismatch vs reference"

    # multi-step grid with a ragged last block (exercise the tiled path)
    k_x2, k_r2 = jax.random.split(k_x)
    n_big = 1000
    xb = jax.random.normal(k_x2, (n_big, 40), jnp.float32)
    rb = jax.random.normal(k_r2, (n_big, 30), jnp.float32)
    ref_b = blend_mlp_reference(xb, rb, raw)
    out_b = jax.block_until_ready(blend_mlp_forward(xb, rb, packed, tile_rows=256))
    assert out_b.shape == (n_big, 3), out_b.shape
    assert jnp.allclose(out_b, ref_b, atol=1e-4, rtol=1e-4), "tiled kernel mismatch"

    # bf16 data path (halves HBM read bytes, MXU-native dtype); f32 accumulation.
    out_bf16 = blend_mlp_forward(
        neighbor_feats.astype(jnp.bfloat16),
        ray_rgb_feats.astype(jnp.bfloat16),
        packed.astype(jnp.bfloat16))
    out_bf16 = jax.block_until_ready(out_bf16)
    assert out_bf16.shape == (batch, rays, 3), out_bf16.shape
    assert jnp.allclose(out_bf16.astype(jnp.float32), ref, atol=8e-2), \
        "bf16 kernel mismatch vs f32 reference"

    print("KERNEL_OK")
</pallas_src>

<mosaic_0001>
module attributes {stable_mosaic.version = 11 : i64} {
  func.func @_blend_mlp_kernel(%arg0: i32, %arg1: memref<16x40xf32, #tpu.memory_space<vmem>>, %arg2: memref<16x30xf32, #tpu.memory_space<vmem>>, %arg3: memref<400x64xf32, #tpu.memory_space<vmem>>, %arg4: memref<16x3xf32, #tpu.memory_space<vmem>>) attributes {dimension_semantics = [#tpu.dimension_semantics<parallel>], iteration_bounds = array<i64: 1>, scalar_prefetch = 0 : i64, scratch_operands = 0 : i64, tpu.core_type = #tpu.core_type<tc>, window_params = [{transform_indices = @transform_0, window_bounds = array<i64: 16, 40>}, {transform_indices = @transform_1, window_bounds = array<i64: 16, 30>}, {pipeline_mode = #tpu.pipeline_mode<synchronous>, transform_indices = @transform_2, window_bounds = array<i64: 400, 64>}, {transform_indices = @transform_3, window_bounds = array<i64: 16, 3>}]} {
    %c0 = arith.constant 0 : index
    %c0_0 = arith.constant 0 : index
    %0 = vector.load %arg1[%c0, %c0_0] : memref<16x40xf32, #tpu.memory_space<vmem>>, vector<16x40xf32>
    %c0_1 = arith.constant 0 : index
    %c0_2 = arith.constant 0 : index
    %1 = vector.load %arg3[%c0_1, %c0_2] : memref<400x64xf32, #tpu.memory_space<vmem>>, vector<40x64xf32>
    %cst = arith.constant dense<0.000000e+00> : vector<16x64xf32>
    %2 = tpu.matmul %0, %1, %cst {dimension_numbers = #tpu.dot_dimension_numbers<[1], [0], [0], [1], [0, 0, 1, 1], [], []>} : vector<16x40xf32>, vector<40x64xf32>, vector<16x64xf32> -> vector<16x64xf32>
    %c392 = arith.constant 392 : index
    %c0_3 = arith.constant 0 : index
    %3 = vector.load %arg3[%c392, %c0_3] : memref<400x64xf32, #tpu.memory_space<vmem>>, vector<1x64xf32>
    %4 = vector.broadcast %3 : vector<1x64xf32> to vector<16x64xf32>
    %5 = arith.addf %2, %4 : vector<16x64xf32>
    %cst_4 = arith.constant 0.000000e+00 : f32
    %6 = vector.broadcast %cst_4 : f32 to vector<16x64xf32>
    %7 = arith.maximumf %5, %6 : vector<16x64xf32>
    %c40 = arith.constant 40 : index
    %c0_5 = arith.constant 0 : index
    %8 = vector.load %arg3[%c40, %c0_5] : memref<400x64xf32, #tpu.memory_space<vmem>>, vector<64x64xf32>
    %cst_6 = arith.constant dense<0.000000e+00> : vector<16x64xf32>
    %9 = tpu.matmul %7, %8, %cst_6 {dimension_numbers = #tpu.dot_dimension_numbers<[1], [0], [0], [1], [0, 0, 1, 1], [], []>} : vector<16x64xf32>, vector<64x64xf32>, vector<16x64xf32> -> vector<16x64xf32>
    %c393 = arith.constant 393 : index
    %c0_7 = arith.constant 0 : index
    %10 = vector.load %arg3[%c393, %c0_7] : memref<400x64xf32, #tpu.memory_space<vmem>>, vector<1x64xf32>
    %11 = vector.broadcast %10 : vector<1x64xf32> to vector<16x64xf32>
    %12 = arith.addf %9, %11 : vector<16x64xf32>
    %cst_8 = arith.constant 0.000000e+00 : f32
    %13 = vector.broadcast %cst_8 : f32 to vector<16x64xf32>
    %14 = arith.maximumf %12, %13 : vector<16x64xf32>
    %c104 = arith.constant 104 : index
    %c0_9 = arith.constant 0 : index
    %15 = vector.load %arg3[%c104, %c0_9] : memref<400x64xf32, #tpu.memory_space<vmem>>, vector<64x64xf32>
    %cst_10 = arith.constant dense<0.000000e+00> : vector<16x64xf32>
    %16 = tpu.matmul %14, %15, %cst_10 {dimension_numbers = #tpu.dot_dimension_numbers<[1], [0], [0], [1], [0, 0, 1, 1], [], []>} : vector<16x64xf32>, vector<64x64xf32>, vector<16x64xf32> -> vector<16x64xf32>
    %c394 = arith.constant 394 : index
    %c0_11 = arith.constant 0 : index
    %17 = vector.load %arg3[%c394, %c0_11] : memref<400x64xf32, #tpu.memory_space<vmem>>, vector<1x64xf32>
    %18 = vector.broadcast %17 : vector<1x64xf32> to vector<16x64xf32>
    %19 = arith.addf %16, %18 : vector<16x64xf32>
    %cst_12 = arith.constant 0.000000e+00 : f32
    %20 = vector.broadcast %cst_12 : f32 to vector<16x64xf32>
    %21 = arith.maximumf %19, %20 : vector<16x64xf32>
    %c0_13 = arith.constant 0 : index
    %c0_14 = arith.constant 0 : index
    %22 = vector.load %arg2[%c0_13, %c0_14] : memref<16x30xf32, #tpu.memory_space<vmem>>, vector<16x30xf32>
    %c168 = arith.constant 168 : index
    %c0_15 = arith.constant 0 : index
    %23 = vector.load %arg3[%c168, %c0_15] : memref<400x64xf32, #tpu.memory_space<vmem>>, vector<64x64xf32>
    %cst_16 = arith.constant dense<0.000000e+00> : vector<16x64xf32>
    %24 = tpu.matmul %21, %23, %cst_16 {dimension_numbers = #tpu.dot_dimension_numbers<[1], [0], [0], [1], [0, 0, 1, 1], [], []>} : vector<16x64xf32>, vector<64x64xf32>, vector<16x64xf32> -> vector<16x64xf32>
    %c232 = arith.constant 232 : index
    %c0_17 = arith.constant 0 : index
    %25 = vector.load %arg3[%c232, %c0_17] : memref<400x64xf32, #tpu.memory_space<vmem>>, vector<30x64xf32>
    %cst_18 = arith.constant dense<0.000000e+00> : vector<16x64xf32>
    %26 = tpu.matmul %22, %25, %cst_18 {dimension_numbers = #tpu.dot_dimension_numbers<[1], [0], [0], [1], [0, 0, 1, 1], [], []>} : vector<16x30xf32>, vector<30x64xf32>, vector<16x64xf32> -> vector<16x64xf32>
    %27 = arith.addf %24, %26 : vector<16x64xf32>
    %c395 = arith.constant 395 : index
    %c0_19 = arith.constant 0 : index
    %28 = vector.load %arg3[%c395, %c0_19] : memref<400x64xf32, #tpu.memory_space<vmem>>, vector<1x64xf32>
    %29 = vector.broadcast %28 : vector<1x64xf32> to vector<16x64xf32>
    %30 = arith.addf %27, %29 : vector<16x64xf32>
    %cst_20 = arith.constant 0.000000e+00 : f32
    %31 = vector.broadcast %cst_20 : f32 to vector<16x64xf32>
    %32 = arith.maximumf %30, %31 : vector<16x64xf32>
    %c264 = arith.constant 264 : index
    %c0_21 = arith.constant 0 : index
    %33 = vector.load %arg3[%c264, %c0_21] : memref<400x64xf32, #tpu.memory_space<vmem>>, vector<64x64xf32>
    %cst_22 = arith.constant dense<0.000000e+00> : vector<16x64xf32>
    %34 = tpu.matmul %32, %33, %cst_22 {dimension_numbers = #tpu.dot_dimension_numbers<[1], [0], [0], [1], [0, 0, 1, 1], [], []>} : vector<16x64xf32>, vector<64x64xf32>, vector<16x64xf32> -> vector<16x64xf32>
    %c396 = arith.constant 396 : index
    %c0_23 = arith.constant 0 : index
    %35 = vector.load %arg3[%c396, %c0_23] : memref<400x64xf32, #tpu.memory_space<vmem>>, vector<1x64xf32>
    %36 = vector.broadcast %35 : vector<1x64xf32> to vector<16x64xf32>
    %37 = arith.addf %34, %36 : vector<16x64xf32>
    %cst_24 = arith.constant 0.000000e+00 : f32
    %38 = vector.broadcast %cst_24 : f32 to vector<16x64xf32>
    %39 = arith.maximumf %37, %38 : vector<16x64xf32>
    %c328 = arith.constant 328 : index
    %c0_25 = arith.constant 0 : index
    %40 = vector.load %arg3[%c328, %c0_25] : memref<400x64xf32, #tpu.memory_space<vmem>>, vector<64x64xf32>
    %cst_26 = arith.constant dense<0.000000e+00> : vector<16x64xf32>
    %41 = tpu.matmul %39, %40, %cst_26 {dimension_numbers = #tpu.dot_dimension_numbers<[1], [0], [0], [1], [0, 0, 1, 1], [], []>} : vector<16x64xf32>, vector<64x64xf32>, vector<16x64xf32> -> vector<16x64xf32>
    %c397 = arith.constant 397 : index
    %c0_27 = arith.constant 0 : index
    %42 = vector.load %arg3[%c397, %c0_27] : memref<400x64xf32, #tpu.memory_space<vmem>>, vector<1x64xf32>
    %43 = vector.broadcast %42 : vector<1x64xf32> to vector<16x64xf32>
    %44 = arith.addf %41, %43 : vector<16x64xf32>
    %45 = vector.extract_strided_slice %44 {offsets = [0, 0], sizes = [16, 3], strides = [1, 1]} : vector<16x64xf32> to vector<16x3xf32>
    %46 = arith.negf %45 : vector<16x3xf32>
    %47 = math.exp %46 : vector<16x3xf32>
    %cst_28 = arith.constant 1.000000e+00 : f32
    %48 = vector.broadcast %cst_28 : f32 to vector<16x3xf32>
    %49 = arith.addf %48, %47 : vector<16x3xf32>
    %50 = arith.divf %48, %49 : vector<16x3xf32>
    %c0_29 = arith.constant 0 : index
    %c0_30 = arith.constant 0 : index
    %51 = vector.load %arg4[%c0_29, %c0_30] : memref<16x3xf32, #tpu.memory_space<vmem>>, vector<16x3xf32>
    tpu.vector_store %arg4[%c0_29, %c0_30], %50 {strides = array<i32>} : memref<16x3xf32, #tpu.memory_space<vmem>>, vector<16x3xf32>,
    return
  }
  func.func @transform_0(%arg0: i32) -> (i32, i32) {
    %c0_i32 = arith.constant 0 : i32
    %c0_i32_0 = arith.constant 0 : i32
    return %arg0, %c0_i32 : i32, i32
  }
  func.func @transform_1(%arg0: i32) -> (i32, i32) {
    %c0_i32 = arith.constant 0 : i32
    %c0_i32_0 = arith.constant 0 : i32
    return %arg0, %c0_i32 : i32, i32
  }
  func.func @transform_2(%arg0: i32) -> (i32, i32) {
    %c0_i32 = arith.constant 0 : i32
    %c0_i32_0 = arith.constant 0 : i32
    %c0_i32_1 = arith.constant 0 : i32
    return %c0_i32, %c0_i32_0 : i32, i32
  }
  func.func @transform_3(%arg0: i32) -> (i32, i32) {
    %c0_i32 = arith.constant 0 : i32
    %c0_i32_0 = arith.constant 0 : i32
    return %arg0, %c0_i32 : i32, i32
  }
}

</mosaic_0001>

<llo_original>
// kernel: tpu_custom_call.1
$region0: #{tpu_custom_call.1}
  #allocation0 [shape = 'u32[]', space=smem, size = 0x4, offset = 0x4, fixed_abs, tag = 'smem constant byte address 0x4 - core index']
  #allocation1 [shape = 'u32[72,128]{1,0:T(1,128)}', space=vmem, size = 0x9000, scoped, tag = 'internal scratch']
  %s0 = inlined_call_operand.vmem [shape: f32[16,40], index: 0, kind: input, shape index: {}]
  %s1 = inlined_call_operand.vmem [shape: f32[16,30], index: 1, kind: input, shape index: {}]
  %s2 = inlined_call_operand.vmem [shape: f32[400,64], index: 2, kind: input, shape index: {}]
  %s3 = inlined_call_operand.vmem [shape: f32[16,3], index: 3, kind: output, shape index: {}]
  %s4 = sld [smem:[#allocation0]]
  $region22: #{tpu_custom_call.1} parent=0
    _
  %s6 = ssub.s32 1, %s4
  %s7 = scalar_select 0, %s6, %s4
  // Predicated region
  $region2: #{tpu_custom_call.1} parent=0 // pred_check
    _
  $region3: #{tpu_custom_call.1} parent=0 // pred_check_branch
    %9 = sbr.rel (0) target = $region5
  $region4: #{tpu_custom_call.1} parent=0 // pred_region
    _
  $region5: #{tpu_custom_call.1} parent=0 // pred_fallthru
    _
  // Predicated region
  $region6: #{tpu_custom_call.1} parent=0 // pred_check
    _
  $region7: #{tpu_custom_call.1} parent=0 // pred_check_branch
    %11 = sbr.rel (0) target = $region9
  $region8: #{tpu_custom_call.1} parent=0 // pred_region
    _
  $region9: #{tpu_custom_call.1} parent=0 // pred_fallthru
    _
  // Predicated region
  $region10: #{tpu_custom_call.1} parent=0 // pred_check
    _
  $region11: #{tpu_custom_call.1} parent=0 // pred_check_branch
    %13 = sbr.rel (0) target = $region13
  $region12: #{tpu_custom_call.1} parent=0 // pred_region
    _
  $region13: #{tpu_custom_call.1} parent=0 // pred_fallthru
    _
  %v14 = vld [vmem:[%s0] sm:$0xff]
  %v15 = vld [vmem:[%s0 + $0x8] sm:$0xff]
  %v16 = vld [vmem:[%s2] sm:$0xff]
  %v17 = vld [vmem:[%s2 + $0x8] sm:$0xff]
  %v18 = vld [vmem:[%s2 + $0x10] sm:$0xff]
  %v19 = vld [vmem:[%s2 + $0x18] sm:$0xff]
  %v20 = vld [vmem:[%s2 + $0x20] sm:$0xff]
  %v21 = vld [vmem:[%s2 + $0x188] sm:$0x1]
  %v22 = vperm.slane %v21, 0
  %vm23 = vcmask 326656
  %v25 = vsel %vm23, %v14, 0
  %v28 = vsel %vm23, %v15, 0
  %30 = vmatpush.msra.mxu0 0.0
  %31 = vmatpush.msra.mxu0 0.0
  %32 = vmatpush.msra.mxu0 0.0
  %33 = vmatpush.msra.mxu0 0.0
  %34 = vmatpush.msra.mxu0 0.0
  %35 = vmatpush.msra.mxu0 0.0
  %36 = vmatpush.msra.mxu0 0.0
  %37 = vmatpush.msra.mxu0 0.0
  %38 = vmatpush.msra.mxu0 0.0
  %39 = vmatpush.msra.mxu0 0.0
  %40 = vmatpush.msra.mxu0 0.0
  %41 = vmatpush.msra.mxu0 %v20
  %42 = vmatpush.msra.mxu0 %v19
  %43 = vmatpush.msra.mxu0 %v18
  %44 = vmatpush.msra.mxu0 %v17
  %45 = vmatpush.msra.mxu0 %v16
  %46 = vmatmul.f32.gmra.mxu0 %v25
  %v47 = vpop.f32.mrf.mxu0
  %v48 = vadd.f32 %v22, %v47
  %49 = vmatmul.f32.gmra.mxu0 %v28
  %v50 = vpop.f32.mrf.mxu0
  %v51 = vadd.f32 %v22, %v50
  %52 = vdwg.mxu0
  %v53 = vmax.f32 %v48, 0.0
  %v54 = vmax.f32 %v51, 0.0
  %v55 = vld [vmem:[%s2 + $0x28] sm:$0xff]
  %v56 = vld [vmem:[%s2 + $0x30] sm:$0xff]
  %v57 = vld [vmem:[%s2 + $0x38] sm:$0xff]
  %v58 = vld [vmem:[%s2 + $0x40] sm:$0xff]
  %v59 = vld [vmem:[%s2 + $0x48] sm:$0xff]
  %v60 = vld [vmem:[%s2 + $0x50] sm:$0xff]
  %v61 = vld [vmem:[%s2 + $0x58] sm:$0xff]
  %v62 = vld [vmem:[%s2 + $0x60] sm:$0xff]
  %v63 = vld [vmem:[%s2 + $0x189] sm:$0x1]
  %v64 = vperm.slane %v63, 0
  %vm65 = vcmask 523264
  %v67 = vsel %vm65, %v53, 0
  %v70 = vsel %vm65, %v54, 0
  %72 = vmatpush.msra.mxu0 0.0
  %73 = vmatpush.msra.mxu0 0.0
  %74 = vmatpush.msra.mxu0 0.0
  %75 = vmatpush.msra.mxu0 0.0
  %76 = vmatpush.msra.mxu0 0.0
  %77 = vmatpush.msra.mxu0 0.0
  %78 = vmatpush.msra.mxu0 0.0
  %79 = vmatpush.msra.mxu0 0.0
  %80 = vmatpush.msra.mxu0 %v62
  %81 = vmatpush.msra.mxu0 %v61
  %82 = vmatpush.msra.mxu0 %v60
  %83 = vmatpush.msra.mxu0 %v59
  %84 = vmatpush.msra.mxu0 %v58
  %85 = vmatpush.msra.mxu0 %v57
  %86 = vmatpush.msra.mxu0 %v56
  %87 = vmatpush.msra.mxu0 %v55
  %88 = vmatmul.f32.gmra.mxu0 %v67
  %v89 = vpop.f32.mrf.mxu0
  %v90 = vadd.f32 %v64, %v89
  %91 = vmatmul.f32.gmra.mxu0 %v70
  %v92 = vpop.f32.mrf.mxu0
  %v93 = vadd.f32 %v64, %v92
  %94 = vdwg.mxu0
  %v95 = vmax.f32 %v90, 0.0
  %v96 = vmax.f32 %v93, 0.0
  %v97 = vld [vmem:[%s2 + $0x68] sm:$0xff]
  %v98 = vld [vmem:[%s2 + $0x70] sm:$0xff]
  %v99 = vld [vmem:[%s2 + $0x78] sm:$0xff]
  %v100 = vld [vmem:[%s2 + $0x80] sm:$0xff]
  %v101 = vld [vmem:[%s2 + $0x88] sm:$0xff]
  %v102 = vld [vmem:[%s2 + $0x90] sm:$0xff]
  %v103 = vld [vmem:[%s2 + $0x98] sm:$0xff]
  %v104 = vld [vmem:[%s2 + $0xa0] sm:$0xff]
  %v105 = vld [vmem:[%s2 + $0x18a] sm:$0x1]
  %v106 = vperm.slane %v105, 0
  %v108 = vsel %vm65, %v95, 0
  %v111 = vsel %vm65, %v96, 0
  %113 = vmatpush.msra.mxu0 0.0
  %114 = vmatpush.msra.mxu0 0.0
  %115 = vmatpush.msra.mxu0 0.0
  %116 = vmatpush.msra.mxu0 0.0
  %117 = vmatpush.msra.mxu0 0.0
  %118 = vmatpush.msra.mxu0 0.0
  %119 = vmatpush.msra.mxu0 0.0
  %120 = vmatpush.msra.mxu0 0.0
  %121 = vmatpush.msra.mxu0 %v104
  %122 = vmatpush.msra.mxu0 %v103
  %123 = vmatpush.msra.mxu0 %v102
  %124 = vmatpush.msra.mxu0 %v101
  %125 = vmatpush.msra.mxu0 %v100
  %126 = vmatpush.msra.mxu0 %v99
  %127 = vmatpush.msra.mxu0 %v98
  %128 = vmatpush.msra.mxu0 %v97
  %129 = vmatmul.f32.gmra.mxu0 %v108
  %v130 = vpop.f32.mrf.mxu0
  %v131 = vadd.f32 %v106, %v130
  %132 = vmatmul.f32.gmra.mxu0 %v111
  %v133 = vpop.f32.mrf.mxu0
  %v134 = vadd.f32 %v106, %v133
  %135 = vdwg.mxu0
  %v136 = vmax.f32 %v131, 0.0
  %v137 = vmax.f32 %v134, 0.0
  %v138 = vld [vmem:[%s1] sm:$0xff]
  %v139 = vld [vmem:[%s1 + $0x8] sm:$0xff]
  %v140 = vld [vmem:[%s2 + $0xa8] sm:$0xff]
  %v141 = vld [vmem:[%s2 + $0xb0] sm:$0xff]
  %v142 = vld [vmem:[%s2 + $0xb8] sm:$0xff]
  %v143 = vld [vmem:[%s2 + $0xc0] sm:$0xff]
  %v144 = vld [vmem:[%s2 + $0xc8] sm:$0xff]
  %v145 = vld [vmem:[%s2 + $0xd0] sm:$0xff]
  %v146 = vld [vmem:[%s2 + $0xd8] sm:$0xff]
  %v147 = vld [vmem:[%s2 + $0xe0] sm:$0xff]
  %v148 = vld [vmem:[%s2 + $0xe8] sm:$0xff]
  %v149 = vld [vmem:[%s2 + $0xf0] sm:$0xff]
  %v150 = vld [vmem:[%s2 + $0xf8] sm:$0xff]
  %v151 = vld [vmem:[%s2 + $0x100] sm:$0x3f]
  %vm152 = vcmask 244736
  %v154 = vsel %vm152, %v138, 0
  %v157 = vsel %vm152, %v139, 0
  %vm159 = vcmask 1045504
  %v161 = vsel %vm159, %v151, 0
  %163 = vmatpush.msra.mxu0 0.0
  %164 = vmatpush.msra.mxu0 0.0
  %165 = vmatpush.msra.mxu0 0.0
  %166 = vmatpush.msra.mxu0 0.0
  %167 = vmatpush.msra.mxu0 0.0
  %168 = vmatpush.msra.mxu0 0.0
  %169 = vmatpush.msra.mxu0 0.0
  %170 = vmatpush.msra.mxu0 0.0
  %171 = vmatpush.msra.mxu0 0.0
  %172 = vmatpush.msra.mxu0 0.0
  %173 = vmatpush.msra.mxu0 0.0
  %174 = vmatpush.msra.mxu0 0.0
  %175 = vmatpush.msra.mxu0 %v161
  %176 = vmatpush.msra.mxu0 %v150
  %177 = vmatpush.msra.mxu0 %v149
  %178 = vmatpush.msra.mxu0 %v148
  %179 = vmatmul.f32.gmra.mxu0 %v154
  %v180 = vpop.f32.mrf.mxu0
  %v181 = vadd.f32 0.0, %v180
  %182 = vmatmul.f32.gmra.mxu0 %v157
  %v183 = vpop.f32.mrf.mxu0
  %v184 = vadd.f32 0.0, %v183
  %185 = vdwg.mxu0
  %v187 = vsel %vm65, %v136, 0
  %v190 = vsel %vm65, %v137, 0
  %192 = vmatpush.msra.mxu0 0.0
  %193 = vmatpush.msra.mxu0 0.0
  %194 = vmatpush.msra.mxu0 0.0
  %195 = vmatpush.msra.mxu0 0.0
  %196 = vmatpush.msra.mxu0 0.0
  %197 = vmatpush.msra.mxu0 0.0
  %198 = vmatpush.msra.mxu0 0.0
  %199 = vmatpush.msra.mxu0 0.0
  %200 = vmatpush.msra.mxu0 %v147
  %201 = vmatpush.msra.mxu0 %v146
  %202 = vmatpush.msra.mxu0 %v145
  %203 = vmatpush.msra.mxu0 %v144
  %204 = vmatpush.msra.mxu0 %v143
  %205 = vmatpush.msra.mxu0 %v142
  %206 = vmatpush.msra.mxu0 %v141
  %207 = vmatpush.msra.mxu0 %v140
  %208 = vmatmul.f32.gmra.mxu0 %v187
  %v209 = vpop.f32.mrf.mxu0
  %v210 = vadd.f32 %v181, %v209
  %211 = vmatmul.f32.gmra.mxu0 %v190
  %v212 = vpop.f32.mrf.mxu0
  %v213 = vadd.f32 %v184, %v212
  %214 = vdwg.mxu0
  %v215 = vld [vmem:[%s2 + $0x18b] sm:$0x1]
  %v216 = vperm.slane %v215, 0
  %v217 = vadd.f32 %v210, %v216
  %v218 = vadd.f32 %v213, %v216
  %v219 = vmax.f32 %v217, 0.0
  %v220 = vmax.f32 %v218, 0.0
  %v221 = vld [vmem:[%s2 + $0x108] sm:$0xff]
  %v222 = vld [vmem:[%s2 + $0x110] sm:$0xff]
  %v223 = vld [vmem:[%s2 + $0x118] sm:$0xff]
  %v224 = vld [vmem:[%s2 + $0x120] sm:$0xff]
  %v225 = vld [vmem:[%s2 + $0x128] sm:$0xff]
  %v226 = vld [vmem:[%s2 + $0x130] sm:$0xff]
  %v227 = vld [vmem:[%s2 + $0x138] sm:$0xff]
  %v228 = vld [vmem:[%s2 + $0x140] sm:$0xff]
  %v229 = vld [vmem:[%s2 + $0x18c] sm:$0x1]
  %v230 = vperm.slane %v229, 0
  %v232 = vsel %vm65, %v219, 0
  %v235 = vsel %vm65, %v220, 0
  %237 = vmatpush.msra.mxu0 0.0
  %238 = vmatpush.msra.mxu0 0.0
  %239 = vmatpush.msra.mxu0 0.0
  %240 = vmatpush.msra.mxu0 0.0
  %241 = vmatpush.msra.mxu0 0.0
  %242 = vmatpush.msra.mxu0 0.0
  %243 = vmatpush.msra.mxu0 0.0
  %244 = vmatpush.msra.mxu0 0.0
  %245 = vmatpush.msra.mxu0 %v228
  %246 = vmatpush.msra.mxu0 %v227
  %247 = vmatpush.msra.mxu0 %v226
  %248 = vmatpush.msra.mxu0 %v225
  %249 = vmatpush.msra.mxu0 %v224
  %250 = vmatpush.msra.mxu0 %v223
  %251 = vmatpush.msra.mxu0 %v222
  %252 = vmatpush.msra.mxu0 %v221
  %253 = vmatmul.f32.gmra.mxu0 %v232
  %v254 = vpop.f32.mrf.mxu0
  %v255 = vadd.f32 %v230, %v254
  %256 = vmatmul.f32.gmra.mxu0 %v235
  %v257 = vpop.f32.mrf.mxu0
  %v258 = vadd.f32 %v230, %v257
  %259 = vdwg.mxu0
  %v260 = vmax.f32 %v255, 0.0
  %v261 = vmax.f32 %v258, 0.0
  %v262 = vld [vmem:[%s2 + $0x148] sm:$0xff]
  %v263 = vld [vmem:[%s2 + $0x150] sm:$0xff]
  %v264 = vld [vmem:[%s2 + $0x158] sm:$0xff]
  %v265 = vld [vmem:[%s2 + $0x160] sm:$0xff]
  %v266 = vld [vmem:[%s2 + $0x168] sm:$0xff]
  %v267 = vld [vmem:[%s2 + $0x170] sm:$0xff]
  %v268 = vld [vmem:[%s2 + $0x178] sm:$0xff]
  %v269 = vld [vmem:[%s2 + $0x180] sm:$0xff]
  %v270 = vld [vmem:[%s2 + $0x18d] sm:$0x1]
  %v271 = vperm.slane %v270, 0
  %v273 = vsel %vm65, %v260, 0
  %v276 = vsel %vm65, %v261, 0
  %278 = vmatpush.msra.mxu0 0.0
  %279 = vmatpush.msra.mxu0 0.0
  %280 = vmatpush.msra.mxu0 0.0
  %281 = vmatpush.msra.mxu0 0.0
  %282 = vmatpush.msra.mxu0 0.0
  %283 = vmatpush.msra.mxu0 0.0
  %284 = vmatpush.msra.mxu0 0.0
  %285 = vmatpush.msra.mxu0 0.0
  %286 = vmatpush.msra.mxu0 %v269
  %287 = vmatpush.msra.mxu0 %v268
  %288 = vmatpush.msra.mxu0 %v267
  %289 = vmatpush.msra.mxu0 %v266
  %290 = vmatpush.msra.mxu0 %v265
  %291 = vmatpush.msra.mxu0 %v264
  %292 = vmatpush.msra.mxu0 %v263
  %293 = vmatpush.msra.mxu0 %v262
  %294 = vmatmul.f32.gmra.mxu0 %v273
  %v295 = vpop.f32.mrf.mxu0
  %v296 = vadd.f32 %v271, %v295
  %297 = vmatmul.f32.gmra.mxu0 %v276
  %v298 = vpop.f32.mrf.mxu0
  %v299 = vadd.f32 %v271, %v298
  %300 = vdwg.mxu0
  %v301 = vxor.u32 %v296, 2147483648
  %v302 = vxor.u32 %v299, 2147483648
  %v303 = vmul.f32 %v301, 1.442695
  %v304 = vpow.pop %v303
  %v305 = vmul.f32 %v302, 1.442695
  %v306 = vpow.pop %v305
  %v307 = vadd.f32 %v304, 1.0
  %v308 = vadd.f32 %v306, 1.0
  %v309 = vrcp.pop %v307
  %v310 = vmul.f32 %v307, %v309
  %v311 = vsub.f32 1.0, %v310
  %v312 = vmul.f32 %v309, %v311
  %v313 = vadd.f32 %v309, %v312
  %vm314 = vweird.f32 %v307
  %vm315 = vweird.f32 %v309
  %vm316 = vmor %vm314, %vm315
  %v317 = vsel %vm316, %v309, %v313
  %v318 = vand.u32 2147483647, %v307
  %vm319 = vcmp.eq.f32.partialorder %v318, 8.507059e+37
  %v320 = vand.u32 %v307, 2147483648
  %v321 = vor.u32 1.1754944e-38, %v320
  %v322 = vsel %vm319, %v321, %v317
  %v323 = vmul.f32 1.0, %v322
  %v324 = vrcp.pop %v308
  %v325 = vmul.f32 %v308, %v324
  %v326 = vsub.f32 1.0, %v325
  %v327 = vmul.f32 %v324, %v326
  %v328 = vadd.f32 %v324, %v327
  %vm329 = vweird.f32 %v308
  %vm330 = vweird.f32 %v324
  %vm331 = vmor %vm329, %vm330
  %v332 = vsel %vm331, %v324, %v328
  %v333 = vand.u32 2147483647, %v308
  %vm334 = vcmp.eq.f32.partialorder %v333, 8.507059e+37
  %v335 = vand.u32 %v308, 2147483648
  %v336 = vor.u32 1.1754944e-38, %v335
  %v337 = vsel %vm334, %v336, %v332
  %v338 = vmul.f32 1.0, %v337
  %vm339 = vcmask 23552
  %340 = vst.msk [vmem:[%s3] sm:$0xff] %vm339, %v323
  %341 = vst.msk [vmem:[%s3 + $0x8] sm:$0xff] %vm339, %v338
  // Predicated region
  $region14: #{tpu_custom_call.1} parent=0 // pred_check
    _
  $region15: #{tpu_custom_call.1} parent=0 // pred_check_branch
    %343 = sbr.rel (0) target = $region17
  $region16: #{tpu_custom_call.1} parent=0 // pred_region
    _
  $region17: #{tpu_custom_call.1} parent=0 // pred_fallthru
    _
  // Predicated region
  $region18: #{tpu_custom_call.1} parent=0 // pred_check
    _
  $region19: #{tpu_custom_call.1} parent=0 // pred_check_branch
    %345 = sbr.rel (0) target = $region21
  $region20: #{tpu_custom_call.1} parent=0 // pred_region
    _
  $region21: #{tpu_custom_call.1} parent=0 // pred_fallthru
    _

</llo_original>
